<compile_context>
chip_gen: v7x
topology: tpu7x:2x2x1
jax: 0.10.0
libtpu: 0.0.40
codegen_flags: <defaults>
</compile_context>

<pallas_src>
import jax
import jax.numpy as jnp
from jax import lax
from jax.experimental import pallas as pl
from jax.experimental.pallas import tpu as pltpu


def bcauss_kernel(x_ref,
                  w1, b1, w2, b2, w3, b3,   # repr_net: 3 x (Linear + ReLU)
                  wh1, bh1,                 # fused y0/y1 first layers   [N, 2h]
                  wh2, bh2,                 # fused y0/y1 second layers  [2h, 2h] block-diag
                  wfz, wfh, bf,             # transposed final heads: (3,N), (3,2h), (3,1)
                  out_ref):                 # (3, tb) = rows [t_pred, y0, y1]
    f32 = jnp.float32
    bf16 = jnp.bfloat16

    # f32 x streamed from HBM, cast to bf16 on the VPU (no host pre-pass).
    x = x_ref[...].astype(bf16)

    # --- representation network ---
    z = jnp.maximum(jnp.dot(x, w1[...], preferred_element_type=f32) + b1[...], 0.0)
    z = jnp.maximum(jnp.dot(z.astype(bf16), w2[...], preferred_element_type=f32) + b2[...], 0.0)
    z = jnp.maximum(jnp.dot(z.astype(bf16), w3[...], preferred_element_type=f32) + b3[...], 0.0)
    z_b = z.astype(bf16)

    # --- y0 / y1 hidden layers fused into two matmuls (block-diag second layer) ---
    h = jnp.maximum(jnp.dot(z_b, wh1[...], preferred_element_type=f32) + bh1[...], 0.0)
    h = jnp.maximum(jnp.dot(h.astype(bf16), wh2[...], preferred_element_type=f32) + bh2[...], 0.0)
    h_b = h.astype(bf16)

    # --- lane-dense final projection: (3, tb) via two summed dots (no concat) ---
    # dot_general contracting both operands' last dims (same MXU pattern as q @ k^T).
    dn = (((1,), (1,)), ((), ()))
    fin = (lax.dot_general(wfz[...], z_b, dn, preferred_element_type=f32)
           + lax.dot_general(wfh[...], h_b, dn, preferred_element_type=f32)
           + bf[...])                       # (3, tb) + (3, 1) lane-broadcast

    # Sigmoid on the t row only; y0/y1 rows stored raw.
    out_ref[0:1, :] = jax.nn.sigmoid(fin[0:1, :]).astype(out_ref.dtype)
    out_ref[1:3, :] = fin[1:3, :].astype(out_ref.dtype)


def init_params(key, input_dim, neurons_per_layer):
    """Synthetic parameters mirroring BCAUSS._init_weights:
    Normal(0, 0.05) weights, zero biases. Stored as [in_dim, out_dim]."""
    D, N = input_dim, neurons_per_layer
    h = N // 2
    dims = [
        (D, N), (N, N), (N, N),   # repr_net
        (N, 1),                   # t_head
        (N, h), (h, h), (h, 1),   # y0_net
        (N, h), (h, h), (h, 1),   # y1_net
    ]
    params = []
    for din, dout in dims:
        key, sub = jax.random.split(key)
        params.append(0.05 * jax.random.normal(sub, (din, dout), jnp.float32))
        params.append(jnp.zeros((1, dout), jnp.float32))
    return params


def _fuse_params(params, matmul_dtype=jnp.bfloat16):
    """Host-side weight fusion: 6 MXU ops in-kernel instead of 10, with the
    three out_dim=1 heads stored transposed/split for a lane-dense output."""
    (w1, b1, w2, b2, w3, b3,
     wt, bt,
     w01, b01, w02, b02, w03, b03,
     w11, b11, w12, b12, w13, b13) = params
    N = w1.shape[1]
    h = w01.shape[1]

    # branch heads, first layer: z -> [h0 | h1]
    wh1 = jnp.concatenate([w01, w11], axis=1)                  # [N, 2h]
    bh1 = jnp.concatenate([b01, b11], axis=1)                  # [1, 2h]

    # branch heads, second layer: block-diagonal keeps branches independent
    zhh = jnp.zeros((h, h), jnp.float32)
    wh2 = jnp.concatenate(
        [jnp.concatenate([w02, zhh], axis=1),
         jnp.concatenate([zhh, w12], axis=1)], axis=0)         # [2h, 2h]
    bh2 = jnp.concatenate([b02, b12], axis=1)                  # [1, 2h]

    # transposed final projections (row 0: t logit from z; rows 1/2: y0/y1 from [h0|h1])
    wfz = jnp.zeros((3, N), jnp.float32).at[0, :].set(wt[:, 0])          # (3, N)
    wfh = jnp.zeros((3, 2 * h), jnp.float32)
    wfh = wfh.at[1, :h].set(w03[:, 0]).at[2, h:].set(w13[:, 0])          # (3, 2h)
    bf = jnp.concatenate([bt, b03, b13], axis=1).reshape(3, 1)           # (3, 1)

    mm = lambda a: a.astype(matmul_dtype)     # bf16 matmul operands
    fp = lambda a: a.astype(jnp.float32)      # f32 biases / accumulation
    return [mm(w1), fp(b1), mm(w2), fp(b2), mm(w3), fp(b3),
            mm(wh1), fp(bh1), mm(wh2), fp(bh2),
            mm(wfz), mm(wfh), fp(bf)]


def bcauss_forward(x, params, eps_key, tile_b=2048):
    """Returns (t_pred, y0, y1, eps) like BCAUSS.forward."""
    B, D = x.shape
    fused = _fuse_params(params)

    # Batch tiling: single full-dim block for small B, otherwise a multiple of
    # 256 (MXU-friendly, satisfies the (8,128) rule on both x and out blocks).
    if B <= tile_b:
        tb = B
    else:
        tb = max(256, (tile_b // 256) * 256)
    grid = (pl.cdiv(B, tb),)   # Pallas clips the edge block; tail rows are independent

    x_spec = pl.BlockSpec((tb, D), lambda i: (i, 0))
    w_specs = [pl.BlockSpec(tuple(w.shape), lambda i: (0, 0)) for w in fused]
    out_spec = pl.BlockSpec((3, tb), lambda i: (0, i))      # lane-dense output slab

    # ~6 KiB/row upper bound on live VMEM (lane-padded x/z/h + double buffers),
    # capped well under v7x's 64 MiB physical VMEM.
    vmem_limit = int(min(56 * 1024 * 1024, max(32 * 1024 * 1024, 6 * 1024 * tb)))

    out = pl.pallas_call(
        bcauss_kernel,
        grid=grid,
        in_specs=[x_spec] + w_specs,
        out_specs=out_spec,
        out_shape=jax.ShapeDtypeStruct((3, B), jnp.float32),
        compiler_params=pltpu.CompilerParams(
            dimension_semantics=("parallel",),
            vmem_limit_bytes=vmem_limit),
    )(x, *fused)

    t_pred = out[0].reshape(B, 1)
    y0 = out[1].reshape(B, 1)
    y1 = out[2].reshape(B, 1)

    # EpsilonLayer: torch.rand_like(t_pred) -> host-side uniform in [0, 1).
    # TODO(synk): on a TPU-only deployment this could move in-kernel via
    # pltpu.prng_seed/prng_random_bits; those have no CPU/interpret lowering.
    eps = jax.random.uniform(eps_key, t_pred.shape, jnp.float32)
    return t_pred, y0, y1, eps


def bcauss_forward_ref(x, params):
    """Pure-JAX reference (unfused) with the same bf16-operand / f32-accum
    quantization as the kernel, for the deterministic outputs."""
    def dot_bf16(a, w):
        return jnp.dot(a.astype(jnp.bfloat16), w.astype(jnp.bfloat16),
                       preferred_element_type=jnp.float32)

    (w1, b1, w2, b2, w3, b3,
     wt, bt,
     w01, b01, w02, b02, w03, b03,
     w11, b11, w12, b12, w13, b13) = params
    z = jax.nn.relu(dot_bf16(x, w1) + b1)
    z = jax.nn.relu(dot_bf16(z, w2) + b2)
    z = jax.nn.relu(dot_bf16(z, w3) + b3)
    t_pred = jax.nn.sigmoid(dot_bf16(z, wt) + bt)
    h0 = jax.nn.relu(dot_bf16(z, w01) + b01)
    h0 = jax.nn.relu(dot_bf16(h0, w02) + b02)
    y0 = dot_bf16(h0, w03) + b03
    h1 = jax.nn.relu(dot_bf16(z, w11) + b11)
    h1 = jax.nn.relu(dot_bf16(h1, w12) + b12)
    y1 = dot_bf16(h1, w13) + b13
    return t_pred, y0, y1


if __name__ == "__main__":
    # Small shapes consistent with the module: input_dim=16, neurons_per_layer=32.
    B, D, N = 8, 16, 32
    key = jax.random.PRNGKey(0)
    key_x, key_p, key_eps = jax.random.split(key, 3)
    x = jax.random.normal(key_x, (B, D), jnp.float32)
    params = init_params(key_p, input_dim=D, neurons_per_layer=N)

    t_pred, y0, y1, eps = jax.block_until_ready(
        bcauss_forward(x, params, key_eps))

    # Correctness check against a pure-JAX reference for the deterministic outputs.
    t_ref, y0_ref, y1_ref = bcauss_forward_ref(x, params)
    assert t_pred.shape == (B, 1) and y0.shape == (B, 1) and y1.shape == (B, 1)
    assert jnp.allclose(t_pred, t_ref, atol=1e-4, rtol=1e-3), \
        float(jnp.max(jnp.abs(t_pred - t_ref)))
    assert jnp.allclose(y0, y0_ref, atol=1e-4, rtol=1e-3), \
        float(jnp.max(jnp.abs(y0 - y0_ref)))
    assert jnp.allclose(y1, y1_ref, atol=1e-4, rtol=1e-3), \
        float(jnp.max(jnp.abs(y1 - y1_ref)))
    # eps is rand_like(t_pred): shape and [0, 1) range.
    assert eps.shape == t_pred.shape
    assert bool(jnp.all((eps >= 0.0) & (eps < 1.0)))

    print("KERNEL_OK")
</pallas_src>

<mosaic_0001>
module attributes {stable_mosaic.version = 11 : i64} {
  func.func @bcauss_kernel(%arg0: i32, %arg1: memref<8x16xf32, #tpu.memory_space<vmem>>, %arg2: memref<16x32xbf16, #tpu.memory_space<vmem>>, %arg3: memref<1x32xf32, #tpu.memory_space<vmem>>, %arg4: memref<32x32xbf16, #tpu.memory_space<vmem>>, %arg5: memref<1x32xf32, #tpu.memory_space<vmem>>, %arg6: memref<32x32xbf16, #tpu.memory_space<vmem>>, %arg7: memref<1x32xf32, #tpu.memory_space<vmem>>, %arg8: memref<32x32xbf16, #tpu.memory_space<vmem>>, %arg9: memref<1x32xf32, #tpu.memory_space<vmem>>, %arg10: memref<32x32xbf16, #tpu.memory_space<vmem>>, %arg11: memref<1x32xf32, #tpu.memory_space<vmem>>, %arg12: memref<3x32xbf16, #tpu.memory_space<vmem>>, %arg13: memref<3x32xbf16, #tpu.memory_space<vmem>>, %arg14: memref<3x1xf32, #tpu.memory_space<vmem>>, %arg15: memref<3x8xf32, #tpu.memory_space<vmem>>) attributes {dimension_semantics = [#tpu.dimension_semantics<parallel>], iteration_bounds = array<i64: 1>, scalar_prefetch = 0 : i64, scratch_operands = 0 : i64, tpu.core_type = #tpu.core_type<tc>, window_params = [{transform_indices = @transform_0, window_bounds = array<i64: 8, 16>}, {pipeline_mode = #tpu.pipeline_mode<synchronous>, transform_indices = @transform_1, window_bounds = array<i64: 16, 32>}, {pipeline_mode = #tpu.pipeline_mode<synchronous>, transform_indices = @transform_2, window_bounds = array<i64: 1, 32>}, {pipeline_mode = #tpu.pipeline_mode<synchronous>, transform_indices = @transform_3, window_bounds = array<i64: 32, 32>}, {pipeline_mode = #tpu.pipeline_mode<synchronous>, transform_indices = @transform_4, window_bounds = array<i64: 1, 32>}, {pipeline_mode = #tpu.pipeline_mode<synchronous>, transform_indices = @transform_5, window_bounds = array<i64: 32, 32>}, {pipeline_mode = #tpu.pipeline_mode<synchronous>, transform_indices = @transform_6, window_bounds = array<i64: 1, 32>}, {pipeline_mode = #tpu.pipeline_mode<synchronous>, transform_indices = @transform_7, window_bounds = array<i64: 32, 32>}, {pipeline_mode = #tpu.pipeline_mode<synchronous>, transform_indices = @transform_8, window_bounds = array<i64: 1, 32>}, {pipeline_mode = #tpu.pipeline_mode<synchronous>, transform_indices = @transform_9, window_bounds = array<i64: 32, 32>}, {pipeline_mode = #tpu.pipeline_mode<synchronous>, transform_indices = @transform_10, window_bounds = array<i64: 1, 32>}, {pipeline_mode = #tpu.pipeline_mode<synchronous>, transform_indices = @transform_11, window_bounds = array<i64: 3, 32>}, {pipeline_mode = #tpu.pipeline_mode<synchronous>, transform_indices = @transform_12, window_bounds = array<i64: 3, 32>}, {pipeline_mode = #tpu.pipeline_mode<synchronous>, transform_indices = @transform_13, window_bounds = array<i64: 3, 1>}, {transform_indices = @transform_14, window_bounds = array<i64: 3, 8>}]} {
    %c0 = arith.constant 0 : index
    %c0_0 = arith.constant 0 : index
    %0 = vector.load %arg1[%c0, %c0_0] : memref<8x16xf32, #tpu.memory_space<vmem>>, vector<8x16xf32>
    %1 = arith.truncf %0 : vector<8x16xf32> to vector<8x16xbf16>
    %c0_1 = arith.constant 0 : index
    %c0_2 = arith.constant 0 : index
    %2 = vector.load %arg2[%c0_1, %c0_2] : memref<16x32xbf16, #tpu.memory_space<vmem>>, vector<16x32xbf16>
    %cst = arith.constant dense<0.000000e+00> : vector<8x32xf32>
    %3 = tpu.matmul %1, %2, %cst {dimension_numbers = #tpu.dot_dimension_numbers<[1], [0], [0], [1], [0, 0, 1, 1], [], []>} : vector<8x16xbf16>, vector<16x32xbf16>, vector<8x32xf32> -> vector<8x32xf32>
    %c0_3 = arith.constant 0 : index
    %c0_4 = arith.constant 0 : index
    %4 = vector.load %arg3[%c0_3, %c0_4] : memref<1x32xf32, #tpu.memory_space<vmem>>, vector<1x32xf32>
    %5 = vector.broadcast %4 : vector<1x32xf32> to vector<8x32xf32>
    %6 = arith.addf %3, %5 : vector<8x32xf32>
    %cst_5 = arith.constant 0.000000e+00 : f32
    %7 = vector.broadcast %cst_5 : f32 to vector<8x32xf32>
    %8 = arith.maximumf %6, %7 : vector<8x32xf32>
    %9 = arith.truncf %8 : vector<8x32xf32> to vector<8x32xbf16>
    %c0_6 = arith.constant 0 : index
    %c0_7 = arith.constant 0 : index
    %10 = vector.load %arg4[%c0_6, %c0_7] : memref<32x32xbf16, #tpu.memory_space<vmem>>, vector<32x32xbf16>
    %cst_8 = arith.constant dense<0.000000e+00> : vector<8x32xf32>
    %11 = tpu.matmul %9, %10, %cst_8 {dimension_numbers = #tpu.dot_dimension_numbers<[1], [0], [0], [1], [0, 0, 1, 1], [], []>} : vector<8x32xbf16>, vector<32x32xbf16>, vector<8x32xf32> -> vector<8x32xf32>
    %c0_9 = arith.constant 0 : index
    %c0_10 = arith.constant 0 : index
    %12 = vector.load %arg5[%c0_9, %c0_10] : memref<1x32xf32, #tpu.memory_space<vmem>>, vector<1x32xf32>
    %13 = vector.broadcast %12 : vector<1x32xf32> to vector<8x32xf32>
    %14 = arith.addf %11, %13 : vector<8x32xf32>
    %cst_11 = arith.constant 0.000000e+00 : f32
    %15 = vector.broadcast %cst_11 : f32 to vector<8x32xf32>
    %16 = arith.maximumf %14, %15 : vector<8x32xf32>
    %17 = arith.truncf %16 : vector<8x32xf32> to vector<8x32xbf16>
    %c0_12 = arith.constant 0 : index
    %c0_13 = arith.constant 0 : index
    %18 = vector.load %arg6[%c0_12, %c0_13] : memref<32x32xbf16, #tpu.memory_space<vmem>>, vector<32x32xbf16>
    %cst_14 = arith.constant dense<0.000000e+00> : vector<8x32xf32>
    %19 = tpu.matmul %17, %18, %cst_14 {dimension_numbers = #tpu.dot_dimension_numbers<[1], [0], [0], [1], [0, 0, 1, 1], [], []>} : vector<8x32xbf16>, vector<32x32xbf16>, vector<8x32xf32> -> vector<8x32xf32>
    %c0_15 = arith.constant 0 : index
    %c0_16 = arith.constant 0 : index
    %20 = vector.load %arg7[%c0_15, %c0_16] : memref<1x32xf32, #tpu.memory_space<vmem>>, vector<1x32xf32>
    %21 = vector.broadcast %20 : vector<1x32xf32> to vector<8x32xf32>
    %22 = arith.addf %19, %21 : vector<8x32xf32>
    %cst_17 = arith.constant 0.000000e+00 : f32
    %23 = vector.broadcast %cst_17 : f32 to vector<8x32xf32>
    %24 = arith.maximumf %22, %23 : vector<8x32xf32>
    %25 = arith.truncf %24 : vector<8x32xf32> to vector<8x32xbf16>
    %c0_18 = arith.constant 0 : index
    %c0_19 = arith.constant 0 : index
    %26 = vector.load %arg8[%c0_18, %c0_19] : memref<32x32xbf16, #tpu.memory_space<vmem>>, vector<32x32xbf16>
    %cst_20 = arith.constant dense<0.000000e+00> : vector<8x32xf32>
    %27 = tpu.matmul %25, %26, %cst_20 {dimension_numbers = #tpu.dot_dimension_numbers<[1], [0], [0], [1], [0, 0, 1, 1], [], []>} : vector<8x32xbf16>, vector<32x32xbf16>, vector<8x32xf32> -> vector<8x32xf32>
    %c0_21 = arith.constant 0 : index
    %c0_22 = arith.constant 0 : index
    %28 = vector.load %arg9[%c0_21, %c0_22] : memref<1x32xf32, #tpu.memory_space<vmem>>, vector<1x32xf32>
    %29 = vector.broadcast %28 : vector<1x32xf32> to vector<8x32xf32>
    %30 = arith.addf %27, %29 : vector<8x32xf32>
    %cst_23 = arith.constant 0.000000e+00 : f32
    %31 = vector.broadcast %cst_23 : f32 to vector<8x32xf32>
    %32 = arith.maximumf %30, %31 : vector<8x32xf32>
    %33 = arith.truncf %32 : vector<8x32xf32> to vector<8x32xbf16>
    %c0_24 = arith.constant 0 : index
    %c0_25 = arith.constant 0 : index
    %34 = vector.load %arg10[%c0_24, %c0_25] : memref<32x32xbf16, #tpu.memory_space<vmem>>, vector<32x32xbf16>
    %cst_26 = arith.constant dense<0.000000e+00> : vector<8x32xf32>
    %35 = tpu.matmul %33, %34, %cst_26 {dimension_numbers = #tpu.dot_dimension_numbers<[1], [0], [0], [1], [0, 0, 1, 1], [], []>} : vector<8x32xbf16>, vector<32x32xbf16>, vector<8x32xf32> -> vector<8x32xf32>
    %c0_27 = arith.constant 0 : index
    %c0_28 = arith.constant 0 : index
    %36 = vector.load %arg11[%c0_27, %c0_28] : memref<1x32xf32, #tpu.memory_space<vmem>>, vector<1x32xf32>
    %37 = vector.broadcast %36 : vector<1x32xf32> to vector<8x32xf32>
    %38 = arith.addf %35, %37 : vector<8x32xf32>
    %cst_29 = arith.constant 0.000000e+00 : f32
    %39 = vector.broadcast %cst_29 : f32 to vector<8x32xf32>
    %40 = arith.maximumf %38, %39 : vector<8x32xf32>
    %41 = arith.truncf %40 : vector<8x32xf32> to vector<8x32xbf16>
    %c0_30 = arith.constant 0 : index
    %c0_31 = arith.constant 0 : index
    %42 = vector.load %arg12[%c0_30, %c0_31] : memref<3x32xbf16, #tpu.memory_space<vmem>>, vector<3x32xbf16>
    %cst_32 = arith.constant dense<0.000000e+00> : vector<3x8xf32>
    %43 = tpu.matmul %42, %25, %cst_32 {dimension_numbers = #tpu.dot_dimension_numbers<[1], [1], [0], [0], [0, 0, 1, 0], [], []>} : vector<3x32xbf16>, vector<8x32xbf16>, vector<3x8xf32> -> vector<3x8xf32>
    %c0_33 = arith.constant 0 : index
    %c0_34 = arith.constant 0 : index
    %44 = vector.load %arg13[%c0_33, %c0_34] : memref<3x32xbf16, #tpu.memory_space<vmem>>, vector<3x32xbf16>
    %cst_35 = arith.constant dense<0.000000e+00> : vector<3x8xf32>
    %45 = tpu.matmul %44, %41, %cst_35 {dimension_numbers = #tpu.dot_dimension_numbers<[1], [1], [0], [0], [0, 0, 1, 0], [], []>} : vector<3x32xbf16>, vector<8x32xbf16>, vector<3x8xf32> -> vector<3x8xf32>
    %46 = arith.addf %43, %45 : vector<3x8xf32>
    %c0_36 = arith.constant 0 : index
    %c0_37 = arith.constant 0 : index
    %47 = vector.load %arg14[%c0_36, %c0_37] : memref<3x1xf32, #tpu.memory_space<vmem>>, vector<3x1xf32>
    %48 = vector.broadcast %47 : vector<3x1xf32> to vector<3x8xf32>
    %49 = arith.addf %46, %48 : vector<3x8xf32>
    %50 = vector.extract_strided_slice %49 {offsets = [0, 0], sizes = [1, 8], strides = [1, 1]} : vector<3x8xf32> to vector<1x8xf32>
    %51 = arith.negf %50 : vector<1x8xf32>
    %52 = math.exp %51 : vector<1x8xf32>
    %cst_38 = arith.constant 1.000000e+00 : f32
    %53 = vector.broadcast %cst_38 : f32 to vector<1x8xf32>
    %54 = arith.addf %53, %52 : vector<1x8xf32>
    %55 = arith.divf %53, %54 : vector<1x8xf32>
    %c0_39 = arith.constant 0 : index
    %c0_40 = arith.constant 0 : index
    %56 = vector.load %arg15[%c0_39, %c0_40] : memref<3x8xf32, #tpu.memory_space<vmem>>, vector<1x8xf32>
    tpu.vector_store %arg15[%c0_39, %c0_40], %55 {strides = array<i32>} : memref<3x8xf32, #tpu.memory_space<vmem>>, vector<1x8xf32>,
    %57 = vector.extract_strided_slice %49 {offsets = [1, 0], sizes = [2, 8], strides = [1, 1]} : vector<3x8xf32> to vector<2x8xf32>
    %c1 = arith.constant 1 : index
    %c0_41 = arith.constant 0 : index
    %58 = vector.load %arg15[%c1, %c0_41] : memref<3x8xf32, #tpu.memory_space<vmem>>, vector<2x8xf32>
    tpu.vector_store %arg15[%c1, %c0_41], %57 {strides = array<i32>} : memref<3x8xf32, #tpu.memory_space<vmem>>, vector<2x8xf32>,
    return
  }
  func.func @transform_0(%arg0: i32) -> (i32, i32) {
    %c0_i32 = arith.constant 0 : i32
    %c0_i32_0 = arith.constant 0 : i32
    return %arg0, %c0_i32 : i32, i32
  }
  func.func @transform_1(%arg0: i32) -> (i32, i32) {
    %c0_i32 = arith.constant 0 : i32
    %c0_i32_0 = arith.constant 0 : i32
    %c0_i32_1 = arith.constant 0 : i32
    return %c0_i32, %c0_i32_0 : i32, i32
  }
  func.func @transform_2(%arg0: i32) -> (i32, i32) {
    %c0_i32 = arith.constant 0 : i32
    %c0_i32_0 = arith.constant 0 : i32
    %c0_i32_1 = arith.constant 0 : i32
    return %c0_i32, %c0_i32_0 : i32, i32
  }
  func.func @transform_3(%arg0: i32) -> (i32, i32) {
    %c0_i32 = arith.constant 0 : i32
    %c0_i32_0 = arith.constant 0 : i32
    %c0_i32_1 = arith.constant 0 : i32
    return %c0_i32, %c0_i32_0 : i32, i32
  }
  func.func @transform_4(%arg0: i32) -> (i32, i32) {
    %c0_i32 = arith.constant 0 : i32
    %c0_i32_0 = arith.constant 0 : i32
    %c0_i32_1 = arith.constant 0 : i32
    return %c0_i32, %c0_i32_0 : i32, i32
  }
  func.func @transform_5(%arg0: i32) -> (i32, i32) {
    %c0_i32 = arith.constant 0 : i32
    %c0_i32_0 = arith.constant 0 : i32
    %c0_i32_1 = arith.constant 0 : i32
    return %c0_i32, %c0_i32_0 : i32, i32
  }
  func.func @transform_6(%arg0: i32) -> (i32, i32) {
    %c0_i32 = arith.constant 0 : i32
    %c0_i32_0 = arith.constant 0 : i32
    %c0_i32_1 = arith.constant 0 : i32
    return %c0_i32, %c0_i32_0 : i32, i32
  }
  func.func @transform_7(%arg0: i32) -> (i32, i32) {
    %c0_i32 = arith.constant 0 : i32
    %c0_i32_0 = arith.constant 0 : i32
    %c0_i32_1 = arith.constant 0 : i32
    return %c0_i32, %c0_i32_0 : i32, i32
  }
  func.func @transform_8(%arg0: i32) -> (i32, i32) {
    %c0_i32 = arith.constant 0 : i32
    %c0_i32_0 = arith.constant 0 : i32
    %c0_i32_1 = arith.constant 0 : i32
    return %c0_i32, %c0_i32_0 : i32, i32
  }
  func.func @transform_9(%arg0: i32) -> (i32, i32) {
    %c0_i32 = arith.constant 0 : i32
    %c0_i32_0 = arith.constant 0 : i32
    %c0_i32_1 = arith.constant 0 : i32
    return %c0_i32, %c0_i32_0 : i32, i32
  }
  func.func @transform_10(%arg0: i32) -> (i32, i32) {
    %c0_i32 = arith.constant 0 : i32
    %c0_i32_0 = arith.constant 0 : i32
    %c0_i32_1 = arith.constant 0 : i32
    return %c0_i32, %c0_i32_0 : i32, i32
  }
  func.func @transform_11(%arg0: i32) -> (i32, i32) {
    %c0_i32 = arith.constant 0 : i32
    %c0_i32_0 = arith.constant 0 : i32
    %c0_i32_1 = arith.constant 0 : i32
    return %c0_i32, %c0_i32_0 : i32, i32
  }
  func.func @transform_12(%arg0: i32) -> (i32, i32) {
    %c0_i32 = arith.constant 0 : i32
    %c0_i32_0 = arith.constant 0 : i32
    %c0_i32_1 = arith.constant 0 : i32
    return %c0_i32, %c0_i32_0 : i32, i32
  }
  func.func @transform_13(%arg0: i32) -> (i32, i32) {
    %c0_i32 = arith.constant 0 : i32
    %c0_i32_0 = arith.constant 0 : i32
    %c0_i32_1 = arith.constant 0 : i32
    return %c0_i32, %c0_i32_0 : i32, i32
  }
  func.func @transform_14(%arg0: i32) -> (i32, i32) {
    %c0_i32 = arith.constant 0 : i32
    %c0_i32_0 = arith.constant 0 : i32
    return %c0_i32, %arg0 : i32, i32
  }
}

</mosaic_0001>

<llo_original>
// kernel: tpu_custom_call.1
$region0: #{tpu_custom_call.1}
  #allocation0 [shape = 'u32[]', space=smem, size = 0x4, offset = 0x4, fixed_abs, tag = 'smem constant byte address 0x4 - core index']
  #allocation1 [shape = 'u32[144,128]{1,0:T(1,128)}', space=vmem, size = 0x12000, scoped, tag = 'internal scratch']
  %s0 = inlined_call_operand.hbm [shape: f32[8,16], index: 0, kind: input, shape index: {}]
  %s1 = inlined_call_operand.hbm [shape: bf16[16,32], index: 1, kind: input, shape index: {}]
  %s2 = inlined_call_operand.hbm [shape: f32[1,32], index: 2, kind: input, shape index: {}]
  %s3 = inlined_call_operand.vmem [shape: bf16[32,32], index: 3, kind: input, shape index: {}]
  %s4 = inlined_call_operand.vmem [shape: f32[1,32], index: 4, kind: input, shape index: {}]
  %s5 = inlined_call_operand.hbm [shape: bf16[32,32], index: 5, kind: input, shape index: {}]
  %s6 = inlined_call_operand.hbm [shape: f32[1,32], index: 6, kind: input, shape index: {}]
  %s7 = inlined_call_operand.hbm [shape: bf16[32,32], index: 7, kind: input, shape index: {}]
  %s8 = inlined_call_operand.hbm [shape: f32[1,32], index: 8, kind: input, shape index: {}]
  %s9 = inlined_call_operand.vmem [shape: bf16[32,32], index: 9, kind: input, shape index: {}]
  %s10 = inlined_call_operand.vmem [shape: f32[1,32], index: 10, kind: input, shape index: {}]
  %s11 = inlined_call_operand.vmem [shape: bf16[3,32], index: 11, kind: input, shape index: {}]
  %s12 = inlined_call_operand.vmem [shape: bf16[3,32], index: 12, kind: input, shape index: {}]
  %s13 = inlined_call_operand.vmem [shape: f32[3,1], index: 13, kind: input, shape index: {}]
  %s14 = inlined_call_operand.hbm [shape: f32[3,8], index: 14, kind: output, shape index: {}]
  %s15 = sld [smem:[#allocation0]]
  $region94: #{tpu_custom_call.1} parent=0
    _
  %s17 = ssub.s32 1, %s15
  %s18 = scalar_select 0, %s17, %s15
  $region1: #{tpu_custom_call.1} parent=0
    #allocation2 [shape = 'u8[4096]{0}', space=vmem, size = 0x1000, scoped, tag = 'input window, operand 0, single buffered']
    #allocation3 [shape = 's32[1]{0}', space=sflag, size = 0x4, scoped, tag = 'scoped memory for tpu_custom_call.1']
    #allocation4 [shape = 's32[1]{0}', space=sflag, size = 0x4, scoped, tag = 'scoped memory for tpu_custom_call.1']
    #allocation5 [shape = 'u8[4096]{0}', space=vmem, size = 0x1000, scoped, tag = 'input window, operand 1, single buffered']
    #allocation6 [shape = 's32[1]{0}', space=sflag, size = 0x4, scoped, tag = 'scoped memory for tpu_custom_call.1']
    #allocation7 [shape = 'u8[512]{0}', space=vmem, size = 0x400, scoped, tag = 'input window, operand 2, single buffered']
    #allocation8 [shape = 'u8[8192]{0}', space=vmem, size = 0x2000, scoped, tag = 'input window, operand 5, single buffered']
    #allocation9 [shape = 's32[1]{0}', space=sflag, size = 0x4, scoped, tag = 'scoped memory for tpu_custom_call.1']
    #allocation10 [shape = 'u8[512]{0}', space=vmem, size = 0x400, scoped, tag = 'input window, operand 6, single buffered']
    #allocation11 [shape = 'u8[8192]{0}', space=vmem, size = 0x2000, scoped, tag = 'input window, operand 7, single buffered']
    #allocation12 [shape = 's32[1]{0}', space=sflag, size = 0x4, scoped, tag = 'scoped memory for tpu_custom_call.1']
    #allocation13 [shape = 'u8[512]{0}', space=vmem, size = 0x400, scoped, tag = 'input window, operand 8, single buffered']
    #allocation14 [shape = 'u8[2048]{0}', space=vmem, size = 0x800, scoped, tag = 'output window, operand 0, single buffered']
    %19 = vsyncpa [#allocation3], 0
    %20 = vsyncpa [#allocation6], 0
    %21 = vsyncpa [#allocation9], 0
    %22 = vsyncpa [#allocation12], 0
    %23 = vsyncpa [#allocation4], 0
    // Predicated region
    $region2: #{tpu_custom_call.1} parent=1 // pred_check
      _
    $region3: #{tpu_custom_call.1} parent=1 // pred_check_branch
      %25 = sbr.rel (0) target = $region5
    $region4: #{tpu_custom_call.1} parent=1 // pred_region
      %s27 = ssub.s32 128, 128
      %28 = vsyncadd [#allocation3], %s27
      %s30 = sshll.u32 [#allocation2], 4
      %s31 = int_to_ptr.vmem [resolvable:$true] %s30
      %33 = dma.hbm_to_vmem [thread:$0]  %s0, 128, %s31, [#allocation3]
    $region5: #{tpu_custom_call.1} parent=1 // pred_fallthru
      _
    // Predicated region
    $region6: #{tpu_custom_call.1} parent=1 // pred_check
      _
    $region7: #{tpu_custom_call.1} parent=1 // pred_check_branch
      %35 = sbr.rel (0) target = $region9
    $region8: #{tpu_custom_call.1} parent=1 // pred_region
      %s37 = ssub.s32 128, 128
      %38 = vsyncadd [#allocation6], %s37
      %s39 = sshll.u32 [#allocation5], 4
      %s40 = int_to_ptr.vmem [resolvable:$true] %s39
      %45 = dma.hbm_to_vmem [thread:$0]  %s1, 128, %s40, [#allocation6], 64, 64, 4
    $region9: #{tpu_custom_call.1} parent=1 // pred_fallthru
      _
    // Predicated region
    $region10: #{tpu_custom_call.1} parent=1 // pred_check
      _
    $region11: #{tpu_custom_call.1} parent=1 // pred_check_branch
      %47 = sbr.rel (0) target = $region13
    $region12: #{tpu_custom_call.1} parent=1 // pred_region
      %s49 = ssub.s32 16, 16
      %50 = vsyncadd [#allocation6], %s49
      %s52 = sshll.u32 [#allocation7], 4
      %s53 = int_to_ptr.vmem [resolvable:$true] %s52
      %55 = dma.hbm_to_vmem [thread:$0]  %s2, 16, %s53, [#allocation6]
    $region13: #{tpu_custom_call.1} parent=1 // pred_fallthru
      _
    // Predicated region
    $region14: #{tpu_custom_call.1} parent=1 // pred_check
      _
    $region15: #{tpu_custom_call.1} parent=1 // pred_check_branch
      %57 = sbr.rel (0) target = $region17
    $region16: #{tpu_custom_call.1} parent=1 // pred_region
      _
    $region17: #{tpu_custom_call.1} parent=1 // pred_fallthru
      _
    // Predicated region
    $region18: #{tpu_custom_call.1} parent=1 // pred_check
      _
    $region19: #{tpu_custom_call.1} parent=1 // pred_check_branch
      %59 = sbr.rel (0) target = $region21
    $region20: #{tpu_custom_call.1} parent=1 // pred_region
      _
    $region21: #{tpu_custom_call.1} parent=1 // pred_fallthru
      _
    // Predicated region
    $region22: #{tpu_custom_call.1} parent=1 // pred_check
      _
    $region23: #{tpu_custom_call.1} parent=1 // pred_check_branch
      %61 = sbr.rel (0) target = $region25
    $region24: #{tpu_custom_call.1} parent=1 // pred_region
      %s63 = ssub.s32 256, 256
      %64 = vsyncadd [#allocation9], %s63
      %s65 = sshll.u32 [#allocation8], 4
      %s66 = int_to_ptr.vmem [resolvable:$true] %s65
      %71 = dma.hbm_to_vmem [thread:$0]  %s5, 256, %s66, [#allocation9], 64, 64, 4
    $region25: #{tpu_custom_call.1} parent=1 // pred_fallthru
      _
    // Predicated region
    $region26: #{tpu_custom_call.1} parent=1 // pred_check
      _
    $region27: #{tpu_custom_call.1} parent=1 // pred_check_branch
      %73 = sbr.rel (0) target = $region29
    $region28: #{tpu_custom_call.1} parent=1 // pred_region
      %s75 = ssub.s32 16, 16
      %76 = vsyncadd [#allocation9], %s75
      %s78 = sshll.u32 [#allocation10], 4
      %s79 = int_to_ptr.vmem [resolvable:$true] %s78
      %81 = dma.hbm_to_vmem [thread:$0]  %s6, 16, %s79, [#allocation9]
    $region29: #{tpu_custom_call.1} parent=1 // pred_fallthru
      _
    // Predicated region
    $region30: #{tpu_custom_call.1} parent=1 // pred_check
      _
    $region31: #{tpu_custom_call.1} parent=1 // pred_check_branch
      %83 = sbr.rel (0) target = $region33
    $region32: #{tpu_custom_call.1} parent=1 // pred_region
      %s85 = ssub.s32 256, 256
      %86 = vsyncadd [#allocation12], %s85
      %s87 = sshll.u32 [#allocation11], 4
      %s88 = int_to_ptr.vmem [resolvable:$true] %s87
      %93 = dma.hbm_to_vmem [thread:$0]  %s7, 256, %s88, [#allocation12], 64, 64, 4
    $region33: #{tpu_custom_call.1} parent=1 // pred_fallthru
      _
    // Predicated region
    $region34: #{tpu_custom_call.1} parent=1 // pred_check
      _
    $region35: #{tpu_custom_call.1} parent=1 // pred_check_branch
      %95 = sbr.rel (0) target = $region37
    $region36: #{tpu_custom_call.1} parent=1 // pred_region
      %s97 = ssub.s32 16, 16
      %98 = vsyncadd [#allocation12], %s97
      %s100 = sshll.u32 [#allocation13], 4
      %s101 = int_to_ptr.vmem [resolvable:$true] %s100
      %103 = dma.hbm_to_vmem [thread:$0]  %s8, 16, %s101, [#allocation12]
    $region37: #{tpu_custom_call.1} parent=1 // pred_fallthru
      _
    // Predicated region
    $region38: #{tpu_custom_call.1} parent=1 // pred_check
      _
    $region39: #{tpu_custom_call.1} parent=1 // pred_check_branch
      %105 = sbr.rel (0) target = $region41
    $region40: #{tpu_custom_call.1} parent=1 // pred_region
      _
    $region41: #{tpu_custom_call.1} parent=1 // pred_fallthru
      _
    // Predicated region
    $region42: #{tpu_custom_call.1} parent=1 // pred_check
      _
    $region43: #{tpu_custom_call.1} parent=1 // pred_check_branch
      %107 = sbr.rel (0) target = $region45
    $region44: #{tpu_custom_call.1} parent=1 // pred_region
      _
    $region45: #{tpu_custom_call.1} parent=1 // pred_fallthru
      _
    // Predicated region
    $region46: #{tpu_custom_call.1} parent=1 // pred_check
      _
    $region47: #{tpu_custom_call.1} parent=1 // pred_check_branch
      %109 = sbr.rel (0) target = $region49
    $region48: #{tpu_custom_call.1} parent=1 // pred_region
      _
    $region49: #{tpu_custom_call.1} parent=1 // pred_fallthru
      _
    // Predicated region
    $region50: #{tpu_custom_call.1} parent=1 // pred_check
      _
    $region51: #{tpu_custom_call.1} parent=1 // pred_check_branch
      %111 = sbr.rel (0) target = $region53
    $region52: #{tpu_custom_call.1} parent=1 // pred_region
      _
    $region53: #{tpu_custom_call.1} parent=1 // pred_fallthru
      _
    // Predicated region
    $region54: #{tpu_custom_call.1} parent=1 // pred_check
      _
    $region55: #{tpu_custom_call.1} parent=1 // pred_check_branch
      %113 = sbr.rel (0) target = $region57
    $region56: #{tpu_custom_call.1} parent=1 // pred_region
      _
    $region57: #{tpu_custom_call.1} parent=1 // pred_fallthru
      _
    // Predicated region
    $region58: #{tpu_custom_call.1} parent=1 // pred_check
      _
    $region59: #{tpu_custom_call.1} parent=1 // pred_check_branch
      %115 = sbr.rel (0) target = $region61
    $region60: #{tpu_custom_call.1} parent=1 // pred_region
      %116 = dma.done [#allocation3], 128
    $region61: #{tpu_custom_call.1} parent=1 // pred_fallthru
      _
    // Predicated region
    $region62: #{tpu_custom_call.1} parent=1 // pred_check
      _
    $region63: #{tpu_custom_call.1} parent=1 // pred_check_branch
      %118 = sbr.rel (0) target = $region65
    $region64: #{tpu_custom_call.1} parent=1 // pred_region
      %119 = dma.done [#allocation6], 128
    $region65: #{tpu_custom_call.1} parent=1 // pred_fallthru
      _
    // Predicated region
    $region66: #{tpu_custom_call.1} parent=1 // pred_check
      _
    $region67: #{tpu_custom_call.1} parent=1 // pred_check_branch
      %121 = sbr.rel (0) target = $region69
    $region68: #{tpu_custom_call.1} parent=1 // pred_region
      %122 = dma.done [#allocation6], 16
    $region69: #{tpu_custom_call.1} parent=1 // pred_fallthru
      _
    // Predicated region
    $region70: #{tpu_custom_call.1} parent=1 // pred_check
      _
    $region71: #{tpu_custom_call.1} parent=1 // pred_check_branch
      %124 = sbr.rel (0) target = $region73
    $region72: #{tpu_custom_call.1} parent=1 // pred_region
      %125 = dma.done [#allocation9], 256
    $region73: #{tpu_custom_call.1} parent=1 // pred_fallthru
      _
    // Predicated region
    $region74: #{tpu_custom_call.1} parent=1 // pred_check
      _
    $region75: #{tpu_custom_call.1} parent=1 // pred_check_branch
      %127 = sbr.rel (0) target = $region77
    $region76: #{tpu_custom_call.1} parent=1 // pred_region
      %128 = dma.done [#allocation9], 16
    $region77: #{tpu_custom_call.1} parent=1 // pred_fallthru
      _
    // Predicated region
    $region78: #{tpu_custom_call.1} parent=1 // pred_check
      _
    $region79: #{tpu_custom_call.1} parent=1 // pred_check_branch
      %130 = sbr.rel (0) target = $region81
    $region80: #{tpu_custom_call.1} parent=1 // pred_region
      %131 = dma.done [#allocation12], 256
    $region81: #{tpu_custom_call.1} parent=1 // pred_fallthru
      _
    // Predicated region
    $region82: #{tpu_custom_call.1} parent=1 // pred_check
      _
    $region83: #{tpu_custom_call.1} parent=1 // pred_check_branch
      %133 = sbr.rel (0) target = $region85
    $region84: #{tpu_custom_call.1} parent=1 // pred_region
      %134 = dma.done [#allocation12], 16
    $region85: #{tpu_custom_call.1} parent=1 // pred_fallthru
      _
    %v136 = vld [vmem:[#allocation2] sm:$0xff]
    %v137 = vpack.c.bf16 %v136, %v136
    %v138 = vld [vmem:[#allocation5] sm:$0xf]
    %v139 = vld [vmem:[#allocation5 + $0x4] sm:$0xf]
    %v140 = vld [vmem:[#allocation7] sm:$0x1]
    %v142 = vlaneseq
    %v143 = vshrl.u32 %v142, 7
    %v144 = vsub.s32 0, %v143
    %v145 = vrot.slane %v140, %v144
    %v149 = vunpack.c.l.b16 %v138
    %v150 = vunpack.c.l.b16 %v139
    %v151 = vpack.c.b16 %v150, %v149
    %vm153 = vcmask 130048
    %v155 = vsel %vm153, %v137, 0
    %157 = vmatprep.subr.bf16.mxu0 0
    %158 = vmatpush1.bf16.msra.mxu0 %v151
    %159 = vmatprep.subr.bf16.mxu0 0
    %160 = vmatpush1.bf16.msra.mxu0 0
    %161 = vmatprep.subr.bf16.mxu0 0
    %162 = vmatpush1.bf16.msra.mxu0 0
    %163 = vmatprep.subr.bf16.mxu0 0
    %164 = vmatpush1.bf16.msra.mxu0 0
    %165 = vmatprep.subr.bf16.mxu0 0
    %166 = vmatpush1.bf16.msra.mxu0 0
    %167 = vmatprep.subr.bf16.mxu0 0
    %168 = vmatpush1.bf16.msra.mxu0 0
    %169 = vmatprep.subr.bf16.mxu0 0
    %170 = vmatpush1.bf16.msra.mxu0 0
    %171 = vmatprep.subr.bf16.mxu0 0
    %172 = vmatpush1.bf16.msra.mxu0 0
    %173 = vmatprep.subr.bf16.mxu0 0
    %174 = vmatpush1.bf16.msra.mxu0 0
    %175 = vmatprep.subr.bf16.mxu0 0
    %176 = vmatpush1.bf16.msra.mxu0 0
    %177 = vmatprep.subr.bf16.mxu0 0
    %178 = vmatpush1.bf16.msra.mxu0 0
    %179 = vmatprep.subr.bf16.mxu0 0
    %180 = vmatpush1.bf16.msra.mxu0 0
    %181 = vmatprep.subr.bf16.mxu0 0
    %182 = vmatpush1.bf16.msra.mxu0 0
    %183 = vmatprep.subr.bf16.mxu0 0
    %184 = vmatpush1.bf16.msra.mxu0 0
    %185 = vmatprep.subr.bf16.mxu0 0
    %186 = vmatpush1.bf16.msra.mxu0 0
    %187 = vmatprep.subr.bf16.mxu0 0
    %188 = vmatpush1.bf16.msra.mxu0 0
    %189 = vmatprep.mubr.bf16.mxu0 0
    %190 = vmatmul.mubr.bf16.gmra.mrb[0].mxu0 %v155
    %v191 = vpop.f32.mrb[0].mxu0
    %v192 = vadd.f32 %v145, %v191
    %v193 = vpop.f32.mrb[0].mxu0
    %v194 = vpop.f32.mrb[0].mxu0
    %v195 = vpop.f32.mrb[0].mxu0
    %196 = vdwg.mxu0
    %v197 = vmax.f32 %v192, 0.0
    %v198 = vpack.c.bf16 %v197, %v197
    %v199 = vld [vmem:[%s3] sm:$0xf]
    %v200 = vld [vmem:[%s3 + $0x4] sm:$0xf]
    %v201 = vld [vmem:[%s3 + $0x8] sm:$0xf]
    %v202 = vld [vmem:[%s3 + $0xc] sm:$0xf]
    %v203 = vld [vmem:[%s4] sm:$0x1]
    %v205 = vlaneseq
    %v206 = vshrl.u32 %v205, 7
    %v207 = vsub.s32 0, %v206
    %v208 = vrot.slane %v203, %v207
    %v214 = vunpack.c.l.b16 %v199
    %v215 = vunpack.c.l.b16 %v200
    %v216 = vunpack.c.l.b16 %v201
    %v217 = vunpack.c.l.b16 %v202
    %v218 = vpack.c.b16 %v215, %v214
    %v219 = vpack.c.b16 %v217, %v216
    %vm222 = vcmask 261120
    %v224 = vsel %vm222, %v198, 0
    %226 = vmatprep.subr.bf16.mxu0 0
    %227 = vmatpush1.bf16.msra.mxu0 %v218
    %228 = vmatprep.subr.bf16.mxu0 0
    %229 = vmatpush1.bf16.msra.mxu0 %v219
    %230 = vmatprep.subr.bf16.mxu0 0
    %231 = vmatpush1.bf16.msra.mxu0 0
    %232 = vmatprep.subr.bf16.mxu0 0
    %233 = vmatpush1.bf16.msra.mxu0 0
    %234 = vmatprep.subr.bf16.mxu0 0
    %235 = vmatpush1.bf16.msra.mxu0 0
    %236 = vmatprep.subr.bf16.mxu0 0
    %237 = vmatpush1.bf16.msra.mxu0 0
    %238 = vmatprep.subr.bf16.mxu0 0
    %239 = vmatpush1.bf16.msra.mxu0 0
    %240 = vmatprep.subr.bf16.mxu0 0
    %241 = vmatpush1.bf16.msra.mxu0 0
    %242 = vmatprep.subr.bf16.mxu0 0
    %243 = vmatpush1.bf16.msra.mxu0 0
    %244 = vmatprep.subr.bf16.mxu0 0
    %245 = vmatpush1.bf16.msra.mxu0 0
    %246 = vmatprep.subr.bf16.mxu0 0
    %247 = vmatpush1.bf16.msra.mxu0 0
    %248 = vmatprep.subr.bf16.mxu0 0
    %249 = vmatpush1.bf16.msra.mxu0 0
    %250 = vmatprep.subr.bf16.mxu0 0
    %251 = vmatpush1.bf16.msra.mxu0 0
    %252 = vmatprep.subr.bf16.mxu0 0
    %253 = vmatpush1.bf16.msra.mxu0 0
    %254 = vmatprep.subr.bf16.mxu0 0
    %255 = vmatpush1.bf16.msra.mxu0 0
    %256 = vmatprep.subr.bf16.mxu0 0
    %257 = vmatpush1.bf16.msra.mxu0 0
    %258 = vmatprep.mubr.bf16.mxu0 0
    %259 = vmatmul.mubr.bf16.gmra.mrb[0].mxu0 %v224
    %v260 = vpop.f32.mrb[0].mxu0
    %v261 = vadd.f32 %v208, %v260
    %v262 = vpop.f32.mrb[0].mxu0
    %v263 = vpop.f32.mrb[0].mxu0
    %v264 = vpop.f32.mrb[0].mxu0
    %265 = vdwg.mxu0
    %v266 = vmax.f32 %v261, 0.0
    %v267 = vpack.c.bf16 %v266, %v266
    %v268 = vld [vmem:[#allocation8] sm:$0xf]
    %v269 = vld [vmem:[#allocation8 + $0x4] sm:$0xf]
    %v270 = vld [vmem:[#allocation8 + $0x8] sm:$0xf]
    %v271 = vld [vmem:[#allocation8 + $0xc] sm:$0xf]
    %v272 = vld [vmem:[#allocation10] sm:$0x1]
    %v274 = vlaneseq
    %v275 = vshrl.u32 %v274, 7
    %v276 = vsub.s32 0, %v275
    %v277 = vrot.slane %v272, %v276
    %v283 = vunpack.c.l.b16 %v268
    %v284 = vunpack.c.l.b16 %v269
    %v285 = vunpack.c.l.b16 %v270
    %v286 = vunpack.c.l.b16 %v271
    %v287 = vpack.c.b16 %v284, %v283
    %v288 = vpack.c.b16 %v286, %v285
    %v292 = vsel %vm222, %v267, 0
    %294 = vmatprep.subr.bf16.mxu0 0
    %295 = vmatpush1.bf16.msra.mxu0 %v287
    %296 = vmatprep.subr.bf16.mxu0 0
    %297 = vmatpush1.bf16.msra.mxu0 %v288
    %298 = vmatprep.subr.bf16.mxu0 0
    %299 = vmatpush1.bf16.msra.mxu0 0
    %300 = vmatprep.subr.bf16.mxu0 0
    %301 = vmatpush1.bf16.msra.mxu0 0
    %302 = vmatprep.subr.bf16.mxu0 0
    %303 = vmatpush1.bf16.msra.mxu0 0
    %304 = vmatprep.subr.bf16.mxu0 0
    %305 = vmatpush1.bf16.msra.mxu0 0
    %306 = vmatprep.subr.bf16.mxu0 0
    %307 = vmatpush1.bf16.msra.mxu0 0
    %308 = vmatprep.subr.bf16.mxu0 0
    %309 = vmatpush1.bf16.msra.mxu0 0
    %310 = vmatprep.subr.bf16.mxu0 0
    %311 = vmatpush1.bf16.msra.mxu0 0
    %312 = vmatprep.subr.bf16.mxu0 0
    %313 = vmatpush1.bf16.msra.mxu0 0
    %314 = vmatprep.subr.bf16.mxu0 0
    %315 = vmatpush1.bf16.msra.mxu0 0
    %316 = vmatprep.subr.bf16.mxu0 0
    %317 = vmatpush1.bf16.msra.mxu0 0
    %318 = vmatprep.subr.bf16.mxu0 0
    %319 = vmatpush1.bf16.msra.mxu0 0
    %320 = vmatprep.subr.bf16.mxu0 0
    %321 = vmatpush1.bf16.msra.mxu0 0
    %322 = vmatprep.subr.bf16.mxu0 0
    %323 = vmatpush1.bf16.msra.mxu0 0
    %324 = vmatprep.subr.bf16.mxu0 0
    %325 = vmatpush1.bf16.msra.mxu0 0
    %326 = vmatprep.mubr.bf16.mxu0 0
    %327 = vmatmul.mubr.bf16.gmra.mrb[0].mxu0 %v292
    %v328 = vpop.f32.mrb[0].mxu0
    %v329 = vadd.f32 %v277, %v328
    %v330 = vpop.f32.mrb[0].mxu0
    %v331 = vpop.f32.mrb[0].mxu0
    %v332 = vpop.f32.mrb[0].mxu0
    %333 = vdwg.mxu0
    %v334 = vmax.f32 %v329, 0.0
    %v335 = vpack.c.bf16 %v334, %v334
    %v336 = vld [vmem:[#allocation11] sm:$0xf]
    %v337 = vld [vmem:[#allocation11 + $0x4] sm:$0xf]
    %v338 = vld [vmem:[#allocation11 + $0x8] sm:$0xf]
    %v339 = vld [vmem:[#allocation11 + $0xc] sm:$0xf]
    %v340 = vld [vmem:[#allocation13] sm:$0x1]
    %v342 = vlaneseq
    %v343 = vshrl.u32 %v342, 7
    %v344 = vsub.s32 0, %v343
    %v345 = vrot.slane %v340, %v344
    %v351 = vunpack.c.l.b16 %v336
    %v352 = vunpack.c.l.b16 %v337
    %v353 = vunpack.c.l.b16 %v338
    %v354 = vunpack.c.l.b16 %v339
    %v355 = vpack.c.b16 %v352, %v351
    %v356 = vpack.c.b16 %v354, %v353
    %v360 = vsel %vm222, %v335, 0
    %362 = vmatprep.subr.bf16.mxu0 0
    %363 = vmatpush1.bf16.msra.mxu0 %v355
    %364 = vmatprep.subr.bf16.mxu0 0
    %365 = vmatpush1.bf16.msra.mxu0 %v356
    %366 = vmatprep.subr.bf16.mxu0 0
    %367 = vmatpush1.bf16.msra.mxu0 0
    %368 = vmatprep.subr.bf16.mxu0 0
    %369 = vmatpush1.bf16.msra.mxu0 0
    %370 = vmatprep.subr.bf16.mxu0 0
    %371 = vmatpush1.bf16.msra.mxu0 0
    %372 = vmatprep.subr.bf16.mxu0 0
    %373 = vmatpush1.bf16.msra.mxu0 0
    %374 = vmatprep.subr.bf16.mxu0 0
    %375 = vmatpush1.bf16.msra.mxu0 0
    %376 = vmatprep.subr.bf16.mxu0 0
    %377 = vmatpush1.bf16.msra.mxu0 0
    %378 = vmatprep.subr.bf16.mxu0 0
    %379 = vmatpush1.bf16.msra.mxu0 0
    %380 = vmatprep.subr.bf16.mxu0 0
    %381 = vmatpush1.bf16.msra.mxu0 0
    %382 = vmatprep.subr.bf16.mxu0 0
    %383 = vmatpush1.bf16.msra.mxu0 0
    %384 = vmatprep.subr.bf16.mxu0 0
    %385 = vmatpush1.bf16.msra.mxu0 0
    %386 = vmatprep.subr.bf16.mxu0 0
    %387 = vmatpush1.bf16.msra.mxu0 0
    %388 = vmatprep.subr.bf16.mxu0 0
    %389 = vmatpush1.bf16.msra.mxu0 0
    %390 = vmatprep.subr.bf16.mxu0 0
    %391 = vmatpush1.bf16.msra.mxu0 0
    %392 = vmatprep.subr.bf16.mxu0 0
    %393 = vmatpush1.bf16.msra.mxu0 0
    %394 = vmatprep.mubr.bf16.mxu0 0
    %395 = vmatmul.mubr.bf16.gmra.mrb[0].mxu0 %v360
    %v396 = vpop.f32.mrb[0].mxu0
    %v397 = vadd.f32 %v345, %v396
    %v398 = vpop.f32.mrb[0].mxu0
    %v399 = vpop.f32.mrb[0].mxu0
    %v400 = vpop.f32.mrb[0].mxu0
    %401 = vdwg.mxu0
    %v402 = vmax.f32 %v397, 0.0
    %v403 = vpack.c.bf16 %v402, %v402
    %v404 = vld [vmem:[%s9] sm:$0xf]
    %v405 = vld [vmem:[%s9 + $0x4] sm:$0xf]
    %v406 = vld [vmem:[%s9 + $0x8] sm:$0xf]
    %v407 = vld [vmem:[%s9 + $0xc] sm:$0xf]
    %v408 = vld [vmem:[%s10] sm:$0x1]
    %v410 = vlaneseq
    %v411 = vshrl.u32 %v410, 7
    %v412 = vsub.s32 0, %v411
    %v413 = vrot.slane %v408, %v412
    %v419 = vunpack.c.l.b16 %v404
    %v420 = vunpack.c.l.b16 %v405
    %v421 = vunpack.c.l.b16 %v406
    %v422 = vunpack.c.l.b16 %v407
    %v423 = vpack.c.b16 %v420, %v419
    %v424 = vpack.c.b16 %v422, %v421
    %v428 = vsel %vm222, %v403, 0
    %430 = vmatprep.subr.bf16.mxu0 0
    %431 = vmatpush1.bf16.msra.mxu0 %v423
    %432 = vmatprep.subr.bf16.mxu0 0
    %433 = vmatpush1.bf16.msra.mxu0 %v424
    %434 = vmatprep.subr.bf16.mxu0 0
    %435 = vmatpush1.bf16.msra.mxu0 0
    %436 = vmatprep.subr.bf16.mxu0 0
    %437 = vmatpush1.bf16.msra.mxu0 0
    %438 = vmatprep.subr.bf16.mxu0 0
    %439 = vmatpush1.bf16.msra.mxu0 0
    %440 = vmatprep.subr.bf16.mxu0 0
    %441 = vmatpush1.bf16.msra.mxu0 0
    %442 = vmatprep.subr.bf16.mxu0 0
    %443 = vmatpush1.bf16.msra.mxu0 0
    %444 = vmatprep.subr.bf16.mxu0 0
    %445 = vmatpush1.bf16.msra.mxu0 0
    %446 = vmatprep.subr.bf16.mxu0 0
    %447 = vmatpush1.bf16.msra.mxu0 0
    %448 = vmatprep.subr.bf16.mxu0 0
    %449 = vmatpush1.bf16.msra.mxu0 0
    %450 = vmatprep.subr.bf16.mxu0 0
    %451 = vmatpush1.bf16.msra.mxu0 0
    %452 = vmatprep.subr.bf16.mxu0 0
    %453 = vmatpush1.bf16.msra.mxu0 0
    %454 = vmatprep.subr.bf16.mxu0 0
    %455 = vmatpush1.bf16.msra.mxu0 0
    %456 = vmatprep.subr.bf16.mxu0 0
    %457 = vmatpush1.bf16.msra.mxu0 0
    %458 = vmatprep.subr.bf16.mxu0 0
    %459 = vmatpush1.bf16.msra.mxu0 0
    %460 = vmatprep.subr.bf16.mxu0 0
    %461 = vmatpush1.bf16.msra.mxu0 0
    %462 = vmatprep.mubr.bf16.mxu0 0
    %463 = vmatmul.mubr.bf16.gmra.mrb[0].mxu0 %v428
    %v464 = vpop.f32.mrb[0].mxu0
    %v465 = vadd.f32 %v413, %v464
    %v466 = vpop.f32.mrb[0].mxu0
    %v467 = vpop.f32.mrb[0].mxu0
    %v468 = vpop.f32.mrb[0].mxu0
    %469 = vdwg.mxu0
    %v470 = vmax.f32 %v465, 0.0
    %v471 = vpack.c.bf16 %v470, %v470
    %v472 = vld [vmem:[%s11] sm:$0x3]
    %v473 = vld [vmem:[%s12] sm:$0x3]
    %v475 = vsel %vm222, %v473, 0
    %v478 = vsel %vm222, %v471, 0
    %480 = vmatprep.subr.bf16.mxu0 0
    %481 = vmatpush1.bf16.xpose.msra.mxu0 %v478
    %482 = vmatprep.subr.bf16.mxu0 0
    %483 = vmatpush1.bf16.xpose.msra.mxu0 0
    %484 = vmatprep.subr.bf16.mxu0 0
    %485 = vmatpush1.bf16.xpose.msra.mxu0 0
    %486 = vmatprep.subr.bf16.mxu0 0
    %487 = vmatpush1.bf16.xpose.msra.mxu0 0
    %488 = vmatprep.subr.bf16.mxu0 0
    %489 = vmatpush1.bf16.xpose.msra.mxu0 0
    %490 = vmatprep.subr.bf16.mxu0 0
    %491 = vmatpush1.bf16.xpose.msra.mxu0 0
    %492 = vmatprep.subr.bf16.mxu0 0
    %493 = vmatpush1.bf16.xpose.msra.mxu0 0
    %494 = vmatprep.subr.bf16.mxu0 0
    %495 = vmatpush1.bf16.xpose.msra.mxu0 0
    %496 = vmatprep.subr.bf16.mxu0 0
    %497 = vmatpush1.bf16.xpose.msra.mxu0 0
    %498 = vmatprep.subr.bf16.mxu0 0
    %499 = vmatpush1.bf16.xpose.msra.mxu0 0
    %500 = vmatprep.subr.bf16.mxu0 0
    %501 = vmatpush1.bf16.xpose.msra.mxu0 0
    %502 = vmatprep.subr.bf16.mxu0 0
    %503 = vmatpush1.bf16.xpose.msra.mxu0 0
    %504 = vmatprep.subr.bf16.mxu0 0
    %505 = vmatpush1.bf16.xpose.msra.mxu0 0
    %506 = vmatprep.subr.bf16.mxu0 0
    %507 = vmatpush1.bf16.xpose.msra.mxu0 0
    %508 = vmatprep.subr.bf16.mxu0 0
    %509 = vmatpush1.bf16.xpose.msra.mxu0 0
    %510 = vmatprep.subr.bf16.mxu0 0
    %511 = vmatpush1.bf16.xpose.msra.mxu0 0
    %512 = vmatprep.mubr.bf16.mxu0 0
    %513 = vmatmul.mubr.bf16.gmra.mrb[0].mxu0 %v475
    %v514 = vpop.f32.mrb[0].mxu0
    %v515 = vadd.f32 0.0, %v514
    %v516 = vpop.f32.mrb[0].mxu0
    %v517 = vpop.f32.mrb[0].mxu0
    %v518 = vpop.f32.mrb[0].mxu0
    %519 = vdwg.mxu0
    %v521 = vsel %vm222, %v472, 0
    %523 = vmatprep.subr.bf16.mxu0 0
    %524 = vmatpush1.bf16.xpose.msra.mxu0 %v360
    %525 = vmatprep.subr.bf16.mxu0 0
    %526 = vmatpush1.bf16.xpose.msra.mxu0 0
    %527 = vmatprep.subr.bf16.mxu0 0
    %528 = vmatpush1.bf16.xpose.msra.mxu0 0
    %529 = vmatprep.subr.bf16.mxu0 0
    %530 = vmatpush1.bf16.xpose.msra.mxu0 0
    %531 = vmatprep.subr.bf16.mxu0 0
    %532 = vmatpush1.bf16.xpose.msra.mxu0 0
    %533 = vmatprep.subr.bf16.mxu0 0
    %534 = vmatpush1.bf16.xpose.msra.mxu0 0
    %535 = vmatprep.subr.bf16.mxu0 0
    %536 = vmatpush1.bf16.xpose.msra.mxu0 0
    %537 = vmatprep.subr.bf16.mxu0 0
    %538 = vmatpush1.bf16.xpose.msra.mxu0 0
    %539 = vmatprep.subr.bf16.mxu0 0
    %540 = vmatpush1.bf16.xpose.msra.mxu0 0
    %541 = vmatprep.subr.bf16.mxu0 0
    %542 = vmatpush1.bf16.xpose.msra.mxu0 0
    %543 = vmatprep.subr.bf16.mxu0 0
    %544 = vmatpush1.bf16.xpose.msra.mxu0 0
    %545 = vmatprep.subr.bf16.mxu0 0
    %546 = vmatpush1.bf16.xpose.msra.mxu0 0
    %547 = vmatprep.subr.bf16.mxu0 0
    %548 = vmatpush1.bf16.xpose.msra.mxu0 0
    %549 = vmatprep.subr.bf16.mxu0 0
    %550 = vmatpush1.bf16.xpose.msra.mxu0 0
    %551 = vmatprep.subr.bf16.mxu0 0
    %552 = vmatpush1.bf16.xpose.msra.mxu0 0
    %553 = vmatprep.subr.bf16.mxu0 0
    %554 = vmatpush1.bf16.xpose.msra.mxu0 0
    %555 = vmatprep.mubr.bf16.mxu0 0
    %556 = vmatmul.mubr.bf16.gmra.mrb[0].mxu0 %v521
    %v557 = vpop.f32.mrb[0].mxu0
    %v558 = vadd.f32 %v515, %v557
    %v559 = vpop.f32.mrb[0].mxu0
    %v560 = vpop.f32.mrb[0].mxu0
    %v561 = vpop.f32.mrb[0].mxu0
    %562 = vdwg.mxu0
    %v563 = vld [vmem:[%s13] sm:$0x7]
    %565 = vset.pattern.permute.xlu0 0
    %566 = vperm.xlu0 %565, %v563
    %v567 = vpop.permute.xlu0 %566
    %v569 = vadd.f32 %v558, %v567
    %v570 = vxor.u32 %v569, 2147483648
    %v571 = vmul.f32 %v570, 1.442695
    %v572 = vpow.pop %v571
    %v573 = vadd.f32 %v572, 1.0
    %v574 = vrcp.pop %v573
    %v575 = vmul.f32 1.0, %v574
    %vm576 = vcmask 57344
    %577 = vst.msk [vmem:[#allocation14] sm:$0x1] %vm576, %v575
    %vm578 = vcmask 59393
    %579 = vst.msk [vmem:[#allocation14] sm:$0x6] %vm578, %v569
    // Predicated region
    $region86: #{tpu_custom_call.1} parent=1 // pred_check
      _
    $region87: #{tpu_custom_call.1} parent=1 // pred_check_branch
      %581 = sbr.rel (0) target = $region89
    $region88: #{tpu_custom_call.1} parent=1 // pred_region
      %s583 = ssub.s32 64, 64
      %584 = vsyncadd [#allocation4], %s583
      %s586 = sshll.u32 [#allocation14], 4
      %s587 = int_to_ptr.vmem [resolvable:$true] %s586
      %589 = dma.vmem_to_hbm [thread:$0]  %s587, 64, %s14, [#allocation4]
    $region89: #{tpu_custom_call.1} parent=1 // pred_fallthru
      _
    // Predicated region
    $region90: #{tpu_custom_call.1} parent=1 // pred_check
      _
    $region91: #{tpu_custom_call.1} parent=1 // pred_check_branch
      %591 = sbr.rel (0) target = $region93
    $region92: #{tpu_custom_call.1} parent=1 // pred_region
      %592 = dma.done [#allocation4], 64
    $region93: #{tpu_custom_call.1} parent=1 // pred_fallthru
      _
    %593 = vsyncpa [#allocation3], 1
    %594 = vsyncpa [#allocation6], 1
    %595 = vsyncpa [#allocation9], 1
    %596 = vsyncpa [#allocation12], 1
    %597 = vsyncpa [#allocation4], 1

</llo_original>
